<compile_context>
chip_gen: v7x
topology: tpu7x:2x2x1
jax: 0.10.0
libtpu: 0.0.40
codegen_flags: <defaults>
</compile_context>

<pallas_src>
import jax
import jax.numpy as jnp
from jax.experimental import pallas as pl
from jax.experimental.pallas import tpu as pltpu

NEG_SLOPE = 0.01   # nn.LeakyReLU() default negative_slope
LANE = 128


def _leaky_relu(x):
    return jnp.where(x > 0, x, jnp.float32(NEG_SLOPE) * x)


def _classifier_kernel(h_ref, m_ref, inv_ref, w0_ref, b0_ref, w1_ref, b1_ref,
                       w2_ref, b2_ref, o_ref, acc_ref):
    s = pl.program_id(1)

    @pl.when(s == 0)
    def _():
        acc_ref[...] = jnp.zeros_like(acc_ref)

    # (tb, ts, H) activation chunk; per-chunk f32 upcast (bf16 inputs accepted,
    # accumulation stays f32).  ts is bounded (<=128 at real shapes) by the S
    # grid axis, so this temp stays small and is accounted for in tb derivation.
    h = h_ref[...].astype(jnp.float32)
    m = m_ref[...].astype(jnp.float32)                  # (tb, ts) 0/1 mask
    acc_ref[...] += jnp.sum(h * m[..., None], axis=1)   # (tb, H) masked partial sum

    @pl.when(s == pl.num_programs(1) - 1)
    def _():
        # exact masked mean: inv_ref is 1/max(count,1), precomputed in wrapper
        emb = acc_ref[...] * inv_ref[...]                               # (tb, H)
        x = jnp.dot(emb, w0_ref[...], preferred_element_type=jnp.float32) + b0_ref[...]
        x = _leaky_relu(x)
        x = jnp.dot(x, w1_ref[...], preferred_element_type=jnp.float32) + b1_ref[...]
        x = _leaky_relu(x)
        # final layer is zero-padded to a lane-dense (multiple-of-128) width
        x = jnp.dot(x, w2_ref[...], preferred_element_type=jnp.float32) + b2_ref[...]
        o_ref[...] = x.astype(o_ref.dtype)


def _round_up(x, m):
    return ((x + m - 1) // m) * m


def _vmem_limit_bytes():
    """~3/4 of physical VMEM, capped at 100 MiB (v7x: ~48 MiB, v5e/v6e: ~96 MiB)."""
    cap = None
    try:
        cap = getattr(pltpu.get_tpu_info(), "vmem_capacity_bytes", None)
    except Exception:
        cap = None
    if not cap:
        cap = 64 * 1024 * 1024   # conservative fallback = v7x physical VMEM
    return int(min(cap * 3 // 4, 100 * 1024 * 1024))


def _pick_tiles(B, S, H, n_pad, in_bytes, vmem_limit):
    """Pick (tb, ts) so 2x double-buffered input + f32 temp + weights fit VMEM."""
    ts = S if S <= 256 else 128                      # S tile (multiple of 8 / full S)
    # resident weights/biases are double-buffered by default
    weight_bytes = 2 * 4 * (H * 512 + 512 + 512 * 256 + 256 + 256 * n_pad + n_pad)
    budget = max(vmem_limit - weight_bytes - (2 << 20), 1 << 20)
    # per batch-row: 2x pipelined input + in-kernel f32 upcast temp + mask + out + acc
    per_row = ts * H * (2 * in_bytes + 4) + 2 * ts * 4 + 2 * n_pad * 4 + H * 4
    tb = max(8, min(256, budget // per_row))
    tb = (tb // 8) * 8
    if tb >= 128:
        tb = (tb // 128) * 128                       # MXU-friendly M dimension
    tb = min(tb, _round_up(B, 8))                    # don't pad batch past one tile
    return tb, ts


def text_classifier_forward(last_hidden_state, attention_mask, params, *, tb=None, ts=None):
    """last_hidden_state: (B, S, H) f32/bf16; attention_mask: (B, S) 0/1."""
    B, S, H = last_hidden_state.shape
    num_classes = params["w2"].shape[1]
    n_pad = _round_up(num_classes, LANE)

    vmem_limit = _vmem_limit_bytes()
    in_bytes = jnp.dtype(last_hidden_state.dtype).itemsize
    tb_auto, ts_auto = _pick_tiles(B, S, H, n_pad, in_bytes, vmem_limit)
    tb = tb_auto if tb is None else tb
    ts = ts_auto if ts is None else ts

    # --- pad the final layer to a lane-dense output width (multiple of 128) ---
    w2 = jnp.pad(params["w2"].astype(jnp.float32), ((0, 0), (0, n_pad - num_classes)))
    b2 = jnp.pad(params["b2"].astype(jnp.float32), ((0, 0), (0, n_pad - num_classes)))

    # --- exact masked-mean denominator in the wrapper (tiny XLA op) ---
    # clamp to >=1: all-masked rows return 0 instead of the reference's NaN.
    mask_f32 = attention_mask.astype(jnp.float32)
    inv_counts = 1.0 / jnp.maximum(mask_f32.sum(axis=1, keepdims=True), 1.0)   # (B, 1)

    # --- pad batch to a multiple of tb and seq to a multiple of ts ---
    bp = _round_up(B, tb)
    sp = _round_up(S, ts)
    h = last_hidden_state
    if (bp, sp) != (B, S):
        h = jnp.pad(h, ((0, bp - B), (0, sp - S), (0, 0)))
        mask_f32 = jnp.pad(mask_f32, ((0, bp - B), (0, sp - S)))   # padded tokens masked
    if bp != B:
        inv_counts = jnp.pad(inv_counts, ((0, bp - B), (0, 0)))

    grid = (bp // tb, sp // ts)                      # batch (parallel) x seq (arbitrary)
    const = lambda i, s: (0, 0)
    in_specs = [
        pl.BlockSpec((tb, ts, H), lambda i, s: (i, s, 0)),   # activations: tiled
        pl.BlockSpec((tb, ts), lambda i, s: (i, s)),         # mask: tiled
        pl.BlockSpec((tb, 1), lambda i, s: (i, 0)),          # 1/count: batch-tiled
        pl.BlockSpec(params["w0"].shape, const),             # weights/biases:
        pl.BlockSpec(params["b0"].shape, const),             # constant index maps
        pl.BlockSpec(params["w1"].shape, const),             # -> resident in VMEM,
        pl.BlockSpec(params["b1"].shape, const),             #    never re-DMA'd
        pl.BlockSpec(w2.shape, const),
        pl.BlockSpec(b2.shape, const),
    ]
    out_spec = pl.BlockSpec((tb, n_pad), lambda i, s: (i, 0))

    out = pl.pallas_call(
        _classifier_kernel,
        out_shape=jax.ShapeDtypeStruct((bp, n_pad), jnp.float32),
        grid=grid,
        in_specs=in_specs,
        out_specs=out_spec,
        scratch_shapes=[pltpu.VMEM((tb, H), jnp.float32)],   # pooled-sum accumulator
        compiler_params=pltpu.CompilerParams(
            dimension_semantics=("parallel", "arbitrary"),
            vmem_limit_bytes=vmem_limit,
        ),
    )(h, mask_f32, inv_counts,
      params["w0"], params["b0"], params["w1"], params["b1"], w2, b2)

    return out[:B, :num_classes]


def init_params(key, n_inputs=32, num_classes=8):
    """Deterministic synthetic weights matching the module's layer shapes."""
    k0, k1, k2, k3, k4, k5 = jax.random.split(key, 6)
    # stored as (in, out); biases as (1, out) for clean 2-D broadcasting in-kernel
    return {
        "w0": jax.random.normal(k0, (n_inputs, 512), jnp.float32) * 0.05,
        "b0": jax.random.normal(k1, (1, 512), jnp.float32) * 0.05,
        "w1": jax.random.normal(k2, (512, 256), jnp.float32) * 0.05,
        "b1": jax.random.normal(k3, (1, 256), jnp.float32) * 0.05,
        "w2": jax.random.normal(k4, (256, num_classes), jnp.float32) * 0.05,
        "b2": jax.random.normal(k5, (1, num_classes), jnp.float32) * 0.05,
    }


def reference_forward(last_hidden_state, attention_mask, params):
    masked = last_hidden_state * attention_mask[..., None]
    emb = masked.sum(axis=1) / attention_mask.sum(axis=1, keepdims=True)
    x = emb @ params["w0"] + params["b0"]
    x = jnp.where(x > 0, x, NEG_SLOPE * x)
    x = x @ params["w1"] + params["b1"]
    x = jnp.where(x > 0, x, NEG_SLOPE * x)
    return x @ params["w2"] + params["b2"]


if __name__ == "__main__":
    B, S, H = 16, 8, 32          # batch, seq, hidden(=n_inputs)
    NUM_CLASSES = 8

    key = jax.random.PRNGKey(0)
    kh, km, kp = jax.random.split(key, 3)

    # bf16 activations: halves the dominant (B,S,H) HBM read; kernel upcasts per-tile
    last_hidden_state = jax.random.normal(kh, (B, S, H), jnp.float32).astype(jnp.bfloat16)
    # attention mask: first `lengths` tokens valid per row (always >= 1 valid token)
    lengths = 1 + jax.random.randint(km, (B,), 0, S)
    attention_mask = (jnp.arange(S)[None, :] < lengths[:, None]).astype(jnp.float32)

    params = init_params(kp, n_inputs=H, num_classes=NUM_CLASSES)

    out = text_classifier_forward(last_hidden_state, attention_mask, params)
    out = jax.block_until_ready(out)

    # reference computed on the same (bf16-rounded) activations, upcast to f32
    ref = reference_forward(last_hidden_state.astype(jnp.float32), attention_mask, params)
    assert out.shape == (B, NUM_CLASSES)
    assert jnp.allclose(out, ref, atol=2e-3, rtol=2e-3), "mismatch vs reference"

    print("KERNEL_OK")
</pallas_src>

<mosaic_0001>
module attributes {stable_mosaic.version = 11 : i64} {
  func.func @_classifier_kernel(%arg0: i32, %arg1: i32, %arg2: memref<16x8x32xbf16, #tpu.memory_space<vmem>>, %arg3: memref<16x8xf32, #tpu.memory_space<vmem>>, %arg4: memref<16x1xf32, #tpu.memory_space<vmem>>, %arg5: memref<32x512xf32, #tpu.memory_space<vmem>>, %arg6: memref<1x512xf32, #tpu.memory_space<vmem>>, %arg7: memref<512x256xf32, #tpu.memory_space<vmem>>, %arg8: memref<1x256xf32, #tpu.memory_space<vmem>>, %arg9: memref<256x128xf32, #tpu.memory_space<vmem>>, %arg10: memref<1x128xf32, #tpu.memory_space<vmem>>, %arg11: memref<16x128xf32, #tpu.memory_space<vmem>>, %arg12: memref<16x32xf32, #tpu.memory_space<vmem>>) attributes {dimension_semantics = [#tpu.dimension_semantics<parallel>, #tpu.dimension_semantics<arbitrary>], iteration_bounds = array<i64: 1, 1>, scalar_prefetch = 0 : i64, scratch_operands = 1 : i64, tpu.core_type = #tpu.core_type<tc>, window_params = [{transform_indices = @transform_0, window_bounds = array<i64: 16, 8, 32>}, {transform_indices = @transform_1, window_bounds = array<i64: 16, 8>}, {transform_indices = @transform_2, window_bounds = array<i64: 16, 1>}, {pipeline_mode = #tpu.pipeline_mode<synchronous>, transform_indices = @transform_3, window_bounds = array<i64: 32, 512>}, {pipeline_mode = #tpu.pipeline_mode<synchronous>, transform_indices = @transform_4, window_bounds = array<i64: 1, 512>}, {pipeline_mode = #tpu.pipeline_mode<synchronous>, transform_indices = @transform_5, window_bounds = array<i64: 512, 256>}, {pipeline_mode = #tpu.pipeline_mode<synchronous>, transform_indices = @transform_6, window_bounds = array<i64: 1, 256>}, {pipeline_mode = #tpu.pipeline_mode<synchronous>, transform_indices = @transform_7, window_bounds = array<i64: 256, 128>}, {pipeline_mode = #tpu.pipeline_mode<synchronous>, transform_indices = @transform_8, window_bounds = array<i64: 1, 128>}, {transform_indices = @transform_9, window_bounds = array<i64: 16, 128>}]} {
    %c0_i32 = arith.constant 0 : i32
    %0 = arith.cmpi eq, %arg1, %c0_i32 : i32
    %1 = arith.extui %0 : i1 to i32
    %c0_i32_0 = arith.constant 0 : i32
    %2 = arith.cmpi ne, %1, %c0_i32_0 : i32
    scf.if %2 {
      %cst_11 = arith.constant 0.000000e+00 : f32
      %16 = vector.broadcast %cst_11 : f32 to vector<16x32xf32>
      %c0_12 = arith.constant 0 : index
      %c0_13 = arith.constant 0 : index
      %17 = vector.load %arg12[%c0_12, %c0_13] : memref<16x32xf32, #tpu.memory_space<vmem>>, vector<16x32xf32>
      tpu.vector_store %arg12[%c0_12, %c0_13], %16 {strides = array<i32>} : memref<16x32xf32, #tpu.memory_space<vmem>>, vector<16x32xf32>,
    } else {
    }
    %c0 = arith.constant 0 : index
    %c0_1 = arith.constant 0 : index
    %c0_2 = arith.constant 0 : index
    %3 = vector.load %arg2[%c0, %c0_1, %c0_2] : memref<16x8x32xbf16, #tpu.memory_space<vmem>>, vector<16x8x32xbf16>
    %4 = arith.extf %3 : vector<16x8x32xbf16> to vector<16x8x32xf32>
    %c0_3 = arith.constant 0 : index
    %c0_4 = arith.constant 0 : index
    %5 = vector.load %arg3[%c0_3, %c0_4] : memref<16x8xf32, #tpu.memory_space<vmem>>, vector<16x8xf32>
    %c0_5 = arith.constant 0 : index
    %c0_6 = arith.constant 0 : index
    %6 = vector.load %arg12[%c0_5, %c0_6] : memref<16x32xf32, #tpu.memory_space<vmem>>, vector<16x32xf32>
    %7 = vector.shape_cast %5 : vector<16x8xf32> to vector<16x8x1xf32>
    %8 = vector.broadcast %7 : vector<16x8x1xf32> to vector<16x8x32xf32>
    %9 = arith.mulf %4, %8 : vector<16x8x32xf32>
    %cst = arith.constant dense<0.000000e+00> : vector<16x32xf32>
    %10 = vector.multi_reduction <add>, %9, %cst [1] : vector<16x8x32xf32> to vector<16x32xf32>
    %11 = arith.addf %6, %10 : vector<16x32xf32>
    %c0_7 = arith.constant 0 : index
    %c0_8 = arith.constant 0 : index
    %12 = vector.load %arg12[%c0_7, %c0_8] : memref<16x32xf32, #tpu.memory_space<vmem>>, vector<16x32xf32>
    tpu.vector_store %arg12[%c0_7, %c0_8], %11 {strides = array<i32>} : memref<16x32xf32, #tpu.memory_space<vmem>>, vector<16x32xf32>,
    %c0_i32_9 = arith.constant 0 : i32
    %13 = arith.cmpi eq, %arg1, %c0_i32_9 : i32
    %14 = arith.extui %13 : i1 to i32
    %c0_i32_10 = arith.constant 0 : i32
    %15 = arith.cmpi ne, %14, %c0_i32_10 : i32
    scf.if %15 {
      %c0_11 = arith.constant 0 : index
      %c0_12 = arith.constant 0 : index
      %16 = vector.load %arg12[%c0_11, %c0_12] : memref<16x32xf32, #tpu.memory_space<vmem>>, vector<16x32xf32>
      %c0_13 = arith.constant 0 : index
      %c0_14 = arith.constant 0 : index
      %17 = vector.load %arg4[%c0_13, %c0_14] : memref<16x1xf32, #tpu.memory_space<vmem>>, vector<16x1xf32>
      %18 = vector.broadcast %17 : vector<16x1xf32> to vector<16x32xf32>
      %19 = arith.mulf %16, %18 : vector<16x32xf32>
      %c0_15 = arith.constant 0 : index
      %c0_16 = arith.constant 0 : index
      %20 = vector.load %arg5[%c0_15, %c0_16] : memref<32x512xf32, #tpu.memory_space<vmem>>, vector<32x512xf32>
      %cst_17 = arith.constant dense<0.000000e+00> : vector<16x512xf32>
      %21 = tpu.matmul %19, %20, %cst_17 {dimension_numbers = #tpu.dot_dimension_numbers<[1], [0], [0], [1], [0, 0, 1, 1], [], []>} : vector<16x32xf32>, vector<32x512xf32>, vector<16x512xf32> -> vector<16x512xf32>
      %c0_18 = arith.constant 0 : index
      %c0_19 = arith.constant 0 : index
      %22 = vector.load %arg6[%c0_18, %c0_19] : memref<1x512xf32, #tpu.memory_space<vmem>>, vector<1x512xf32>
      %23 = vector.broadcast %22 : vector<1x512xf32> to vector<16x512xf32>
      %24 = arith.addf %21, %23 : vector<16x512xf32>
      %cst_20 = arith.constant 0.000000e+00 : f32
      %25 = vector.broadcast %cst_20 : f32 to vector<16x512xf32>
      %26 = arith.cmpf ogt, %24, %25 : vector<16x512xf32>
      %cst_21 = arith.constant 0.00999999977 : f32
      %27 = vector.broadcast %cst_21 : f32 to vector<16x512xf32>
      %28 = arith.mulf %27, %24 : vector<16x512xf32>
      %29 = arith.select %26, %24, %28 : vector<16x512xi1>, vector<16x512xf32>
      %c0_22 = arith.constant 0 : index
      %c0_23 = arith.constant 0 : index
      %30 = vector.load %arg7[%c0_22, %c0_23] : memref<512x256xf32, #tpu.memory_space<vmem>>, vector<512x256xf32>
      %cst_24 = arith.constant dense<0.000000e+00> : vector<16x256xf32>
      %31 = tpu.matmul %29, %30, %cst_24 {dimension_numbers = #tpu.dot_dimension_numbers<[1], [0], [0], [1], [0, 0, 1, 1], [], []>} : vector<16x512xf32>, vector<512x256xf32>, vector<16x256xf32> -> vector<16x256xf32>
      %c0_25 = arith.constant 0 : index
      %c0_26 = arith.constant 0 : index
      %32 = vector.load %arg8[%c0_25, %c0_26] : memref<1x256xf32, #tpu.memory_space<vmem>>, vector<1x256xf32>
      %33 = vector.broadcast %32 : vector<1x256xf32> to vector<16x256xf32>
      %34 = arith.addf %31, %33 : vector<16x256xf32>
      %cst_27 = arith.constant 0.000000e+00 : f32
      %35 = vector.broadcast %cst_27 : f32 to vector<16x256xf32>
      %36 = arith.cmpf ogt, %34, %35 : vector<16x256xf32>
      %cst_28 = arith.constant 0.00999999977 : f32
      %37 = vector.broadcast %cst_28 : f32 to vector<16x256xf32>
      %38 = arith.mulf %37, %34 : vector<16x256xf32>
      %39 = arith.select %36, %34, %38 : vector<16x256xi1>, vector<16x256xf32>
      %c0_29 = arith.constant 0 : index
      %c0_30 = arith.constant 0 : index
      %40 = vector.load %arg9[%c0_29, %c0_30] : memref<256x128xf32, #tpu.memory_space<vmem>>, vector<256x128xf32>
      %cst_31 = arith.constant dense<0.000000e+00> : vector<16x128xf32>
      %41 = tpu.matmul %39, %40, %cst_31 {dimension_numbers = #tpu.dot_dimension_numbers<[1], [0], [0], [1], [0, 0, 1, 1], [], []>} : vector<16x256xf32>, vector<256x128xf32>, vector<16x128xf32> -> vector<16x128xf32>
      %c0_32 = arith.constant 0 : index
      %c0_33 = arith.constant 0 : index
      %42 = vector.load %arg10[%c0_32, %c0_33] : memref<1x128xf32, #tpu.memory_space<vmem>>, vector<1x128xf32>
      %43 = vector.broadcast %42 : vector<1x128xf32> to vector<16x128xf32>
      %44 = arith.addf %41, %43 : vector<16x128xf32>
      %c0_34 = arith.constant 0 : index
      %c0_35 = arith.constant 0 : index
      %45 = vector.load %arg11[%c0_34, %c0_35] : memref<16x128xf32, #tpu.memory_space<vmem>>, vector<16x128xf32>
      tpu.vector_store %arg11[%c0_34, %c0_35], %44 {strides = array<i32>} : memref<16x128xf32, #tpu.memory_space<vmem>>, vector<16x128xf32>,
    } else {
    }
    return
  }
  func.func @transform_0(%arg0: i32, %arg1: i32) -> (i32, i32, i32) {
    %c0_i32 = arith.constant 0 : i32
    %c0_i32_0 = arith.constant 0 : i32
    return %arg0, %arg1, %c0_i32 : i32, i32, i32
  }
  func.func @transform_1(%arg0: i32, %arg1: i32) -> (i32, i32) {
    %c0_i32 = arith.constant 0 : i32
    return %arg0, %arg1 : i32, i32
  }
  func.func @transform_2(%arg0: i32, %arg1: i32) -> (i32, i32) {
    %c0_i32 = arith.constant 0 : i32
    %c0_i32_0 = arith.constant 0 : i32
    return %arg0, %c0_i32 : i32, i32
  }
  func.func @transform_3(%arg0: i32, %arg1: i32) -> (i32, i32) {
    %c0_i32 = arith.constant 0 : i32
    %c0_i32_0 = arith.constant 0 : i32
    %c0_i32_1 = arith.constant 0 : i32
    return %c0_i32, %c0_i32_0 : i32, i32
  }
  func.func @transform_4(%arg0: i32, %arg1: i32) -> (i32, i32) {
    %c0_i32 = arith.constant 0 : i32
    %c0_i32_0 = arith.constant 0 : i32
    %c0_i32_1 = arith.constant 0 : i32
    return %c0_i32, %c0_i32_0 : i32, i32
  }
  func.func @transform_5(%arg0: i32, %arg1: i32) -> (i32, i32) {
    %c0_i32 = arith.constant 0 : i32
    %c0_i32_0 = arith.constant 0 : i32
    %c0_i32_1 = arith.constant 0 : i32
    return %c0_i32, %c0_i32_0 : i32, i32
  }
  func.func @transform_6(%arg0: i32, %arg1: i32) -> (i32, i32) {
    %c0_i32 = arith.constant 0 : i32
    %c0_i32_0 = arith.constant 0 : i32
    %c0_i32_1 = arith.constant 0 : i32
    return %c0_i32, %c0_i32_0 : i32, i32
  }
  func.func @transform_7(%arg0: i32, %arg1: i32) -> (i32, i32) {
    %c0_i32 = arith.constant 0 : i32
    %c0_i32_0 = arith.constant 0 : i32
    %c0_i32_1 = arith.constant 0 : i32
    return %c0_i32, %c0_i32_0 : i32, i32
  }
  func.func @transform_8(%arg0: i32, %arg1: i32) -> (i32, i32) {
    %c0_i32 = arith.constant 0 : i32
    %c0_i32_0 = arith.constant 0 : i32
    %c0_i32_1 = arith.constant 0 : i32
    return %c0_i32, %c0_i32_0 : i32, i32
  }
  func.func @transform_9(%arg0: i32, %arg1: i32) -> (i32, i32) {
    %c0_i32 = arith.constant 0 : i32
    %c0_i32_0 = arith.constant 0 : i32
    return %arg0, %c0_i32 : i32, i32
  }
}

</mosaic_0001>

<llo_original>
// kernel: tpu_custom_call.1
$region0: #{tpu_custom_call.1}
  #allocation0 [shape = 'u32[]', space=smem, size = 0x4, offset = 0x4, fixed_abs, tag = 'smem constant byte address 0x4 - core index']
  #allocation1 [shape = 'u32[144,128]{1,0:T(1,128)}', space=vmem, size = 0x12000, scoped, tag = 'internal scratch']
  #allocation2 [shape = 'f32[16,32]{1,0:T(8,128)}', space=vmem, size = 0x2000, scoped, tag = 'scratch operand']
  %s0 = inlined_call_operand.hbm [shape: bf16[16,8,32], index: 0, kind: input, shape index: {}]
  %s1 = inlined_call_operand.vmem [shape: f32[16,8], index: 1, kind: input, shape index: {}]
  %s2 = inlined_call_operand.vmem [shape: f32[16,1], index: 2, kind: input, shape index: {}]
  %s3 = inlined_call_operand.hbm [shape: f32[32,512], index: 3, kind: input, shape index: {}]
  %s4 = inlined_call_operand.vmem [shape: f32[1,512], index: 4, kind: input, shape index: {}]
  %s5 = inlined_call_operand.hbm [shape: f32[512,256], index: 5, kind: input, shape index: {}]
  %s6 = inlined_call_operand.vmem [shape: f32[1,256], index: 6, kind: input, shape index: {}]
  %s7 = inlined_call_operand.hbm [shape: f32[256,128], index: 7, kind: input, shape index: {}]
  %s8 = inlined_call_operand.vmem [shape: f32[1,128], index: 8, kind: input, shape index: {}]
  %s9 = inlined_call_operand.hbm [shape: f32[16,128], index: 9, kind: output, shape index: {}]
  %s10 = sld [smem:[#allocation0]]
  $region70: #{tpu_custom_call.1} parent=0
    _
  %s12 = ssub.s32 1, %s10
  %s13 = scalar_select 0, %s12, %s10
  $region1: #{tpu_custom_call.1} parent=0
    #allocation3 [shape = 'u8[32768]{0}', space=vmem, size = 0x8000, scoped, tag = 'input window, operand 0, single buffered']
    #allocation4 [shape = 's32[1]{0}', space=sflag, size = 0x4, scoped, tag = 'scoped memory for tpu_custom_call.1']
    #allocation5 [shape = 's32[1]{0}', space=sflag, size = 0x4, scoped, tag = 'scoped memory for tpu_custom_call.1']
    #allocation6 [shape = 'u8[65536]{0}', space=vmem, size = 0x10000, scoped, tag = 'input window, operand 3, single buffered']
    #allocation7 [shape = 's32[1]{0}', space=sflag, size = 0x4, scoped, tag = 'scoped memory for tpu_custom_call.1']
    #allocation8 [shape = 'u8[524288]{0}', space=vmem, size = 0x80000, scoped, tag = 'input window, operand 5, single buffered']
    #allocation9 [shape = 'u8[131072]{0}', space=vmem, size = 0x20000, scoped, tag = 'input window, operand 7, single buffered']
    #allocation10 [shape = 's32[1]{0}', space=sflag, size = 0x4, scoped, tag = 'scoped memory for tpu_custom_call.1']
    #allocation11 [shape = 'u8[8192]{0}', space=vmem, size = 0x2000, scoped, tag = 'output window, operand 0, single buffered']
    %14 = vsyncpa [#allocation4], 0
    %15 = vsyncpa [#allocation7], 0
    %16 = vsyncpa [#allocation10], 0
    %17 = vsyncpa [#allocation5], 0
    // Predicated region
    $region2: #{tpu_custom_call.1} parent=1 // pred_check
      _
    $region3: #{tpu_custom_call.1} parent=1 // pred_check_branch
      %19 = sbr.rel (0) target = $region5
    $region4: #{tpu_custom_call.1} parent=1 // pred_region
      %s21 = ssub.s32 1024, 1024
      %22 = vsyncadd [#allocation4], %s21
      %s23 = sshll.u32 [#allocation3], 4
      %s24 = int_to_ptr.vmem [resolvable:$true] %s23
      %29 = dma.hbm_to_vmem [thread:$0]  %s0, 1024, %s24, [#allocation4], 64, 64, 4
    $region5: #{tpu_custom_call.1} parent=1 // pred_fallthru
      _
    // Predicated region
    $region6: #{tpu_custom_call.1} parent=1 // pred_check
      _
    $region7: #{tpu_custom_call.1} parent=1 // pred_check_branch
      %31 = sbr.rel (0) target = $region9
    $region8: #{tpu_custom_call.1} parent=1 // pred_region
      _
    $region9: #{tpu_custom_call.1} parent=1 // pred_fallthru
      _
    // Predicated region
    $region10: #{tpu_custom_call.1} parent=1 // pred_check
      _
    $region11: #{tpu_custom_call.1} parent=1 // pred_check_branch
      %33 = sbr.rel (0) target = $region13
    $region12: #{tpu_custom_call.1} parent=1 // pred_region
      _
    $region13: #{tpu_custom_call.1} parent=1 // pred_fallthru
      _
    // Predicated region
    $region14: #{tpu_custom_call.1} parent=1 // pred_check
      _
    $region15: #{tpu_custom_call.1} parent=1 // pred_check_branch
      %35 = sbr.rel (0) target = $region17
    $region16: #{tpu_custom_call.1} parent=1 // pred_region
      %s37 = ssub.s32 2048, 2048
      %38 = vsyncadd [#allocation7], %s37
      %s39 = sshll.u32 [#allocation6], 4
      %s40 = int_to_ptr.vmem [resolvable:$true] %s39
      %45 = dma.hbm_to_vmem [thread:$0]  %s3, 2048, %s40, [#allocation7], 512, 512, 32
    $region17: #{tpu_custom_call.1} parent=1 // pred_fallthru
      _
    // Predicated region
    $region18: #{tpu_custom_call.1} parent=1 // pred_check
      _
    $region19: #{tpu_custom_call.1} parent=1 // pred_check_branch
      %47 = sbr.rel (0) target = $region21
    $region20: #{tpu_custom_call.1} parent=1 // pred_region
      _
    $region21: #{tpu_custom_call.1} parent=1 // pred_fallthru
      _
    // Predicated region
    $region22: #{tpu_custom_call.1} parent=1 // pred_check
      _
    $region23: #{tpu_custom_call.1} parent=1 // pred_check_branch
      %49 = sbr.rel (0) target = $region25
    $region24: #{tpu_custom_call.1} parent=1 // pred_region
      %s51 = ssub.s32 16384, 16384
      %52 = vsyncadd [#allocation7], %s51
      %s53 = sshll.u32 [#allocation8], 4
      %s54 = int_to_ptr.vmem [resolvable:$true] %s53
      %59 = dma.hbm_to_vmem [thread:$0]  %s5, 16384, %s54, [#allocation7], 256, 256, 16
    $region25: #{tpu_custom_call.1} parent=1 // pred_fallthru
      _
    // Predicated region
    $region26: #{tpu_custom_call.1} parent=1 // pred_check
      _
    $region27: #{tpu_custom_call.1} parent=1 // pred_check_branch
      %61 = sbr.rel (0) target = $region29
    $region28: #{tpu_custom_call.1} parent=1 // pred_region
      _
    $region29: #{tpu_custom_call.1} parent=1 // pred_fallthru
      _
    // Predicated region
    $region30: #{tpu_custom_call.1} parent=1 // pred_check
      _
    $region31: #{tpu_custom_call.1} parent=1 // pred_check_branch
      %63 = sbr.rel (0) target = $region33
    $region32: #{tpu_custom_call.1} parent=1 // pred_region
      %s65 = ssub.s32 4096, 4096
      %66 = vsyncadd [#allocation10], %s65
      %s67 = sshll.u32 [#allocation9], 4
      %s68 = int_to_ptr.vmem [resolvable:$true] %s67
      %73 = dma.hbm_to_vmem [thread:$0]  %s7, 4096, %s68, [#allocation10], 128, 128, 8
    $region33: #{tpu_custom_call.1} parent=1 // pred_fallthru
      _
    // Predicated region
    $region34: #{tpu_custom_call.1} parent=1 // pred_check
      _
    $region35: #{tpu_custom_call.1} parent=1 // pred_check_branch
      %75 = sbr.rel (0) target = $region37
    $region36: #{tpu_custom_call.1} parent=1 // pred_region
      _
    $region37: #{tpu_custom_call.1} parent=1 // pred_fallthru
      _
    // Predicated region
    $region38: #{tpu_custom_call.1} parent=1 // pred_check
      _
    $region39: #{tpu_custom_call.1} parent=1 // pred_check_branch
      %77 = sbr.rel (0) target = $region41
    $region40: #{tpu_custom_call.1} parent=1 // pred_region
      %78 = dma.done [#allocation4], 1024
    $region41: #{tpu_custom_call.1} parent=1 // pred_fallthru
      _
    // Predicated region
    $region42: #{tpu_custom_call.1} parent=1 // pred_check
      _
    $region43: #{tpu_custom_call.1} parent=1 // pred_check_branch
      %80 = sbr.rel (0) target = $region45
    $region44: #{tpu_custom_call.1} parent=1 // pred_region
      %81 = dma.done [#allocation7], 2048
    $region45: #{tpu_custom_call.1} parent=1 // pred_fallthru
      _
    // Predicated region
    $region46: #{tpu_custom_call.1} parent=1 // pred_check
      _
    $region47: #{tpu_custom_call.1} parent=1 // pred_check_branch
      %83 = sbr.rel (0) target = $region49
    $region48: #{tpu_custom_call.1} parent=1 // pred_region
      %84 = dma.done [#allocation7], 16384
    $region49: #{tpu_custom_call.1} parent=1 // pred_fallthru
      _
    // Predicated region
    $region50: #{tpu_custom_call.1} parent=1 // pred_check
      _
    $region51: #{tpu_custom_call.1} parent=1 // pred_check_branch
      %86 = sbr.rel (0) target = $region53
    $region52: #{tpu_custom_call.1} parent=1 // pred_region
      %87 = dma.done [#allocation10], 4096
    $region53: #{tpu_custom_call.1} parent=1 // pred_fallthru
      _
    %p88 = scmp.eq.s32.totalorder 0, 0
    // Predicated region
    $region54: #{tpu_custom_call.1} parent=1 // pred_check
      %p89 = pneg %p88
    $region55: #{tpu_custom_call.1} parent=1 // pred_check_branch
      %91 = sbr.rel (%p89) target = $region57
    $region56: #{tpu_custom_call.1} parent=1 // pred_region
      %vm92 = vcmask 261120
      %93 = vst.msk [vmem:[#allocation2] sm:$0xff] %vm92, 0.0
      %94 = vst.msk [vmem:[#allocation2 + $0x8] sm:$0xff] %vm92, 0.0
    $region57: #{tpu_custom_call.1} parent=1 // pred_fallthru
      _
    %v95 = vld [vmem:[#allocation3] sm:$0xf]
    %v96 = vld [vmem:[#allocation3 + $0x4] sm:$0xf]
    %v97 = vld [vmem:[#allocation3 + $0x8] sm:$0xf]
    %v98 = vld [vmem:[#allocation3 + $0xc] sm:$0xf]
    %v99 = vld [vmem:[#allocation3 + $0x10] sm:$0xf]
    %v100 = vld [vmem:[#allocation3 + $0x14] sm:$0xf]
    %v101 = vld [vmem:[#allocation3 + $0x18] sm:$0xf]
    %v102 = vld [vmem:[#allocation3 + $0x1c] sm:$0xf]
    %v103 = vld [vmem:[#allocation3 + $0x20] sm:$0xf]
    %v104 = vld [vmem:[#allocation3 + $0x24] sm:$0xf]
    %v105 = vld [vmem:[#allocation3 + $0x28] sm:$0xf]
    %v106 = vld [vmem:[#allocation3 + $0x2c] sm:$0xf]
    %v107 = vld [vmem:[#allocation3 + $0x30] sm:$0xf]
    %v108 = vld [vmem:[#allocation3 + $0x34] sm:$0xf]
    %v109 = vld [vmem:[#allocation3 + $0x38] sm:$0xf]
    %v110 = vld [vmem:[#allocation3 + $0x3c] sm:$0xf]
    %v111 = vunpack.c.l.bf16 %v95
    %v112 = vunpack.c.l.bf16 %v96
    %v113 = vunpack.c.l.bf16 %v97
    %v114 = vunpack.c.l.bf16 %v98
    %v115 = vunpack.c.l.bf16 %v99
    %v116 = vunpack.c.l.bf16 %v100
    %v117 = vunpack.c.l.bf16 %v101
    %v118 = vunpack.c.l.bf16 %v102
    %v119 = vunpack.c.l.bf16 %v103
    %v120 = vunpack.c.l.bf16 %v104
    %v121 = vunpack.c.l.bf16 %v105
    %v122 = vunpack.c.l.bf16 %v106
    %v123 = vunpack.c.l.bf16 %v107
    %v124 = vunpack.c.l.bf16 %v108
    %v125 = vunpack.c.l.bf16 %v109
    %v126 = vunpack.c.l.bf16 %v110
    %v127 = vld [vmem:[%s1] sm:$0xff]
    %v128 = vld [vmem:[%s1 + $0x8] sm:$0xff]
    %v129 = vld [vmem:[#allocation2] sm:$0xff]
    %v130 = vld [vmem:[#allocation2 + $0x8] sm:$0xff]
    %v131 = vlaneseq
    %v132 = vshrl.u32 %v131, 7
    %v133 = vsub.s32 0, %v132
    %v134 = vrot.slane %v127, %v133
    %136 = vbcast.lane.b32.xlu0 %v134, 256
    %v137 = vpop.permute.xlu0 %136
    %v138 = vlaneseq
    %v139 = vshrl.u32 %v138, 7
    %v140 = vsub.s32 1, %v139
    %v141 = vrot.slane %v127, %v140
    %143 = vbcast.lane.b32.xlu0 %v141, 256
    %v144 = vpop.permute.xlu0 %143
    %v145 = vlaneseq
    %v146 = vshrl.u32 %v145, 7
    %v147 = vsub.s32 2, %v146
    %v148 = vrot.slane %v127, %v147
    %150 = vbcast.lane.b32.xlu0 %v148, 256
    %v151 = vpop.permute.xlu0 %150
    %v152 = vlaneseq
    %v153 = vshrl.u32 %v152, 7
    %v154 = vsub.s32 3, %v153
    %v155 = vrot.slane %v127, %v154
    %157 = vbcast.lane.b32.xlu0 %v155, 256
    %v158 = vpop.permute.xlu0 %157
    %v159 = vlaneseq
    %v160 = vshrl.u32 %v159, 7
    %v161 = vsub.s32 4, %v160
    %v162 = vrot.slane %v127, %v161
    %164 = vbcast.lane.b32.xlu0 %v162, 256
    %v165 = vpop.permute.xlu0 %164
    %v166 = vlaneseq
    %v167 = vshrl.u32 %v166, 7
    %v168 = vsub.s32 5, %v167
    %v169 = vrot.slane %v127, %v168
    %171 = vbcast.lane.b32.xlu0 %v169, 256
    %v172 = vpop.permute.xlu0 %171
    %v173 = vlaneseq
    %v174 = vshrl.u32 %v173, 7
    %v175 = vsub.s32 6, %v174
    %v176 = vrot.slane %v127, %v175
    %178 = vbcast.lane.b32.xlu0 %v176, 256
    %v179 = vpop.permute.xlu0 %178
    %v180 = vlaneseq
    %v181 = vshrl.u32 %v180, 7
    %v182 = vsub.s32 7, %v181
    %v183 = vrot.slane %v127, %v182
    %185 = vbcast.lane.b32.xlu0 %v183, 256
    %v186 = vpop.permute.xlu0 %185
    %v187 = vlaneseq
    %v188 = vshrl.u32 %v187, 7
    %v189 = vsub.s32 0, %v188
    %v190 = vrot.slane %v128, %v189
    %192 = vbcast.lane.b32.xlu0 %v190, 256
    %v193 = vpop.permute.xlu0 %192
    %v194 = vlaneseq
    %v195 = vshrl.u32 %v194, 7
    %v196 = vsub.s32 1, %v195
    %v197 = vrot.slane %v128, %v196
    %199 = vbcast.lane.b32.xlu0 %v197, 256
    %v200 = vpop.permute.xlu0 %199
    %v201 = vlaneseq
    %v202 = vshrl.u32 %v201, 7
    %v203 = vsub.s32 2, %v202
    %v204 = vrot.slane %v128, %v203
    %206 = vbcast.lane.b32.xlu0 %v204, 256
    %v207 = vpop.permute.xlu0 %206
    %v208 = vlaneseq
    %v209 = vshrl.u32 %v208, 7
    %v210 = vsub.s32 3, %v209
    %v211 = vrot.slane %v128, %v210
    %213 = vbcast.lane.b32.xlu0 %v211, 256
    %v214 = vpop.permute.xlu0 %213
    %v215 = vlaneseq
    %v216 = vshrl.u32 %v215, 7
    %v217 = vsub.s32 4, %v216
    %v218 = vrot.slane %v128, %v217
    %220 = vbcast.lane.b32.xlu0 %v218, 256
    %v221 = vpop.permute.xlu0 %220
    %v222 = vlaneseq
    %v223 = vshrl.u32 %v222, 7
    %v224 = vsub.s32 5, %v223
    %v225 = vrot.slane %v128, %v224
    %227 = vbcast.lane.b32.xlu0 %v225, 256
    %v228 = vpop.permute.xlu0 %227
    %v229 = vlaneseq
    %v230 = vshrl.u32 %v229, 7
    %v231 = vsub.s32 6, %v230
    %v232 = vrot.slane %v128, %v231
    %234 = vbcast.lane.b32.xlu0 %v232, 256
    %v235 = vpop.permute.xlu0 %234
    %v236 = vlaneseq
    %v237 = vshrl.u32 %v236, 7
    %v238 = vsub.s32 7, %v237
    %v239 = vrot.slane %v128, %v238
    %241 = vbcast.lane.b32.xlu0 %v239, 256
    %v242 = vpop.permute.xlu0 %241
    %v243 = vmul.f32 %v111, %v137
    %v244 = vmul.f32 %v112, %v144
    %v245 = vmul.f32 %v113, %v151
    %v246 = vmul.f32 %v114, %v158
    %v247 = vmul.f32 %v115, %v165
    %v248 = vmul.f32 %v116, %v172
    %v249 = vmul.f32 %v117, %v179
    %v250 = vmul.f32 %v118, %v186
    %v251 = vmul.f32 %v119, %v193
    %v252 = vmul.f32 %v120, %v200
    %v253 = vmul.f32 %v121, %v207
    %v254 = vmul.f32 %v122, %v214
    %v255 = vmul.f32 %v123, %v221
    %v256 = vmul.f32 %v124, %v228
    %v257 = vmul.f32 %v125, %v235
    %v258 = vmul.f32 %v126, %v242
    %vm259 = vcmask 261120
    %v260 = vsel %vm259, %v243, 0.0
    %v261 = vrot.slane %v260, 4
    %v262 = vadd.f32 %v260, %v261
    %v263 = vrot.slane %v262, 2
    %v264 = vadd.f32 %v262, %v263
    %v265 = vrot.slane %v264, 1
    %v266 = vadd.f32 %v264, %v265
    %v267 = vsel %vm259, %v244, 0.0
    %v268 = vrot.slane %v267, 4
    %v269 = vadd.f32 %v267, %v268
    %v270 = vrot.slane %v269, 2
    %v271 = vadd.f32 %v269, %v270
    %v272 = vrot.slane %v271, 1
    %v273 = vadd.f32 %v271, %v272
    %v274 = vsel %vm259, %v245, 0.0
    %v275 = vrot.slane %v274, 4
    %v276 = vadd.f32 %v274, %v275
    %v277 = vrot.slane %v276, 2
    %v278 = vadd.f32 %v276, %v277
    %v279 = vrot.slane %v278, 1
    %v280 = vadd.f32 %v278, %v279
    %v281 = vsel %vm259, %v246, 0.0
    %v282 = vrot.slane %v281, 4
    %v283 = vadd.f32 %v281, %v282
    %v284 = vrot.slane %v283, 2
    %v285 = vadd.f32 %v283, %v284
    %v286 = vrot.slane %v285, 1
    %v287 = vadd.f32 %v285, %v286
    %v288 = vsel %vm259, %v247, 0.0
    %v289 = vrot.slane %v288, 4
    %v290 = vadd.f32 %v288, %v289
    %v291 = vrot.slane %v290, 2
    %v292 = vadd.f32 %v290, %v291
    %v293 = vrot.slane %v292, 1
    %v294 = vadd.f32 %v292, %v293
    %v295 = vsel %vm259, %v248, 0.0
    %v296 = vrot.slane %v295, 4
    %v297 = vadd.f32 %v295, %v296
    %v298 = vrot.slane %v297, 2
    %v299 = vadd.f32 %v297, %v298
    %v300 = vrot.slane %v299, 1
    %v301 = vadd.f32 %v299, %v300
    %v302 = vsel %vm259, %v249, 0.0
    %v303 = vrot.slane %v302, 4
    %v304 = vadd.f32 %v302, %v303
    %v305 = vrot.slane %v304, 2
    %v306 = vadd.f32 %v304, %v305
    %v307 = vrot.slane %v306, 1
    %v308 = vadd.f32 %v306, %v307
    %v309 = vsel %vm259, %v250, 0.0
    %v310 = vrot.slane %v309, 4
    %v311 = vadd.f32 %v309, %v310
    %v312 = vrot.slane %v311, 2
    %v313 = vadd.f32 %v311, %v312
    %v314 = vrot.slane %v313, 1
    %v315 = vadd.f32 %v313, %v314
    %v316 = vsel %vm259, %v251, 0.0
    %v317 = vrot.slane %v316, 4
    %v318 = vadd.f32 %v316, %v317
    %v319 = vrot.slane %v318, 2
    %v320 = vadd.f32 %v318, %v319
    %v321 = vrot.slane %v320, 1
    %v322 = vadd.f32 %v320, %v321
    %v323 = vsel %vm259, %v252, 0.0
    %v324 = vrot.slane %v323, 4
    %v325 = vadd.f32 %v323, %v324
    %v326 = vrot.slane %v325, 2
    %v327 = vadd.f32 %v325, %v326
    %v328 = vrot.slane %v327, 1
    %v329 = vadd.f32 %v327, %v328
    %v330 = vsel %vm259, %v253, 0.0
    %v331 = vrot.slane %v330, 4
    %v332 = vadd.f32 %v330, %v331
    %v333 = vrot.slane %v332, 2
    %v334 = vadd.f32 %v332, %v333
    %v335 = vrot.slane %v334, 1
    %v336 = vadd.f32 %v334, %v335
    %v337 = vsel %vm259, %v254, 0.0
    %v338 = vrot.slane %v337, 4
    %v339 = vadd.f32 %v337, %v338
    %v340 = vrot.slane %v339, 2
    %v341 = vadd.f32 %v339, %v340
    %v342 = vrot.slane %v341, 1
    %v343 = vadd.f32 %v341, %v342
    %v344 = vsel %vm259, %v255, 0.0
    %v345 = vrot.slane %v344, 4
    %v346 = vadd.f32 %v344, %v345
    %v347 = vrot.slane %v346, 2
    %v348 = vadd.f32 %v346, %v347
    %v349 = vrot.slane %v348, 1
    %v350 = vadd.f32 %v348, %v349
    %v351 = vsel %vm259, %v256, 0.0
    %v352 = vrot.slane %v351, 4
    %v353 = vadd.f32 %v351, %v352
    %v354 = vrot.slane %v353, 2
    %v355 = vadd.f32 %v353, %v354
    %v356 = vrot.slane %v355, 1
    %v357 = vadd.f32 %v355, %v356
    %v358 = vsel %vm259, %v257, 0.0
    %v359 = vrot.slane %v358, 4
    %v360 = vadd.f32 %v358, %v359
    %v361 = vrot.slane %v360, 2
    %v362 = vadd.f32 %v360, %v361
    %v363 = vrot.slane %v362, 1
    %v364 = vadd.f32 %v362, %v363
    %v365 = vsel %vm259, %v258, 0.0
    %v366 = vrot.slane %v365, 4
    %v367 = vadd.f32 %v365, %v366
    %v368 = vrot.slane %v367, 2
    %v369 = vadd.f32 %v367, %v368
    %v370 = vrot.slane %v369, 1
    %v371 = vadd.f32 %v369, %v370
    %vm388 = vcmask 1041409
    %v389 = vsel %vm388, %v273, %v266
    %vm390 = vcmask 1042434
    %v391 = vsel %vm390, %v280, %v389
    %vm392 = vcmask 1043459
    %v393 = vsel %vm392, %v287, %v391
    %vm394 = vcmask 1044484
    %v395 = vsel %vm394, %v294, %v393
    %vm396 = vcmask 1045509
    %v397 = vsel %vm396, %v301, %v395
    %vm398 = vcmask 1046534
    %v399 = vsel %vm398, %v308, %v397
    %vm400 = vcmask 1047559
    %v401 = vsel %vm400, %v315, %v399
    %v402 = vsel %vm388, %v329, %v322
    %v403 = vsel %vm390, %v336, %v402
    %v404 = vsel %vm392, %v343, %v403
    %v405 = vsel %vm394, %v350, %v404
    %v406 = vsel %vm396, %v357, %v405
    %v407 = vsel %vm398, %v364, %v406
    %v408 = vsel %vm400, %v371, %v407
    %v411 = vadd.f32 %v129, %v401
    %v412 = vadd.f32 %v130, %v408
    %413 = vst.msk [vmem:[#allocation2] sm:$0xff] %vm259, %v411
    %414 = vst.msk [vmem:[#allocation2 + $0x8] sm:$0xff] %vm259, %v412
    // Predicated region
    $region58: #{tpu_custom_call.1} parent=1 // pred_check
      %p415 = pneg %p88
    $region59: #{tpu_custom_call.1} parent=1 // pred_check_branch
      %417 = sbr.rel (%p415) target = $region61
    $region60: #{tpu_custom_call.1} parent=1 // pred_region
      %v418 = vld [vmem:[#allocation2] sm:$0xff]
      %v419 = vld [vmem:[#allocation2 + $0x8] sm:$0xff]
      %v420 = vld [vmem:[%s2] sm:$0xff]
      %v421 = vld [vmem:[%s2 + $0x8] sm:$0xff]
      %423 = vset.pattern.permute.xlu0 0
      %424 = vperm.xlu0 %423, %v420
      %v425 = vpop.permute.xlu0 %424
      %428 = vset.pattern.permute.xlu0 0
      %429 = vperm.xlu0 %428, %v421
      %v430 = vpop.permute.xlu0 %429
      %v432 = vmul.f32 %v418, %v425
      %v433 = vmul.f32 %v419, %v430
      %v434 = vld [vmem:[#allocation6] sm:$0xff]
      %v435 = vld [vmem:[#allocation6 + $0x8] sm:$0xff]
      %v436 = vld [vmem:[#allocation6 + $0x10] sm:$0xff]
      %v437 = vld [vmem:[#allocation6 + $0x18] sm:$0xff]
      %v438 = vld [vmem:[#allocation6 + $0x20] sm:$0xff]
      %v439 = vld [vmem:[#allocation6 + $0x28] sm:$0xff]
      %v440 = vld [vmem:[#allocation6 + $0x30] sm:$0xff]
      %v441 = vld [vmem:[#allocation6 + $0x38] sm:$0xff]
      %v442 = vld [vmem:[#allocation6 + $0x40] sm:$0xff]
      %v443 = vld [vmem:[#allocation6 + $0x48] sm:$0xff]
      %v444 = vld [vmem:[#allocation6 + $0x50] sm:$0xff]
      %v445 = vld [vmem:[#allocation6 + $0x58] sm:$0xff]
      %v446 = vld [vmem:[#allocation6 + $0x60] sm:$0xff]
      %v447 = vld [vmem:[#allocation6 + $0x68] sm:$0xff]
      %v448 = vld [vmem:[#allocation6 + $0x70] sm:$0xff]
      %v449 = vld [vmem:[#allocation6 + $0x78] sm:$0xff]
      %v450 = vld [vmem:[%s4] sm:$0xf]
      %v452 = vlaneseq
      %v453 = vshrl.u32 %v452, 7
      %v454 = vsub.s32 0, %v453
      %v455 = vrot.slane %v450, %v454
      %v456 = vlaneseq
      %v457 = vshrl.u32 %v456, 7
      %v458 = vsub.s32 1, %v457
      %v459 = vrot.slane %v450, %v458
      %v460 = vlaneseq
      %v461 = vshrl.u32 %v460, 7
      %v462 = vsub.s32 2, %v461
      %v463 = vrot.slane %v450, %v462
      %v464 = vlaneseq
      %v465 = vshrl.u32 %v464, 7
      %v466 = vsub.s32 3, %v465
      %v467 = vrot.slane %v450, %v466
      %v473 = vsel %vm259, %v432, 0
      %v476 = vsel %vm259, %v433, 0
      %478 = vmatprep.subr.mxu0 %v435
      %479 = vmatpush1.msra.mxu0 %v434
      %480 = vmatprep.subr.mxu0 %v439
      %481 = vmatpush1.msra.mxu0 %v438
      %482 = vmatprep.subr.mxu0 %v443
      %483 = vmatpush1.msra.mxu0 %v442
      %484 = vmatprep.subr.mxu0 %v447
      %485 = vmatpush1.msra.mxu0 %v446
      %486 = vmatprep.subr.mxu0 0.0
      %487 = vmatpush1.msra.mxu0 0.0
      %488 = vmatprep.subr.mxu0 0.0
      %489 = vmatpush1.msra.mxu0 0.0
      %490 = vmatprep.subr.mxu0 0.0
      %491 = vmatpush1.msra.mxu0 0.0
      %492 = vmatprep.subr.mxu0 0.0
      %493 = vmatpush1.msra.mxu0 0.0
      %494 = vmatprep.subr.mxu0 0.0
      %495 = vmatpush1.msra.mxu0 0.0
      %496 = vmatprep.subr.mxu0 0.0
      %497 = vmatpush1.msra.mxu0 0.0
      %498 = vmatprep.subr.mxu0 0.0
      %499 = vmatpush1.msra.mxu0 0.0
      %500 = vmatprep.subr.mxu0 0.0
      %501 = vmatpush1.msra.mxu0 0.0
      %502 = vmatprep.subr.mxu0 0.0
      %503 = vmatpush1.msra.mxu0 0.0
      %504 = vmatprep.subr.mxu0 0.0
      %505 = vmatpush1.msra.mxu0 0.0
      %506 = vmatprep.subr.mxu0 0.0
      %507 = vmatpush1.msra.mxu0 0.0
      %508 = vmatprep.subr.mxu0 0.0
      %509 = vmatpush1.msra.mxu0 0.0
      %510 = vmatprep.subr.mxu0 0.0
      %511 = vmatpush1.msra.mxu0 0.0
      %512 = vmatprep.subr.mxu0 0.0
      %513 = vmatpush1.msra.mxu0 0.0
      %514 = vmatprep.subr.mxu0 0.0
      %515 = vmatpush1.msra.mxu0 0.0
      %516 = vmatprep.subr.mxu0 0.0
      %517 = vmatpush1.msra.mxu0 0.0
      %518 = vmatprep.subr.mxu0 0.0
      %519 = vmatpush1.msra.mxu0 0.0
      %520 = vmatprep.subr.mxu0 0.0
      %521 = vmatpush1.msra.mxu0 0.0
      %522 = vmatprep.subr.mxu0 0.0
      %523 = vmatpush1.msra.mxu0 0.0
      %524 = vmatprep.subr.mxu0 0.0
      %525 = vmatpush1.msra.mxu0 0.0
      %526 = vmatprep.subr.mxu0 0.0
      %527 = vmatpush1.msra.mxu0 0.0
      %528 = vmatprep.subr.mxu0 0.0
      %529 = vmatpush1.msra.mxu0 0.0
      %530 = vmatprep.subr.mxu0 0.0
      %531 = vmatpush1.msra.mxu0 0.0
      %532 = vmatprep.subr.mxu0 0.0
      %533 = vmatpush1.msra.mxu0 0.0
      %534 = vmatprep.subr.mxu0 0.0
      %535 = vmatpush1.msra.mxu0 0.0
      %536 = vmatprep.subr.mxu0 0.0
      %537 = vmatpush1.msra.mxu0 0.0
      %538 = vmatprep.subr.mxu0 0.0
      %539 = vmatpush1.msra.mxu0 0.0
      %540 = vmatprep.subr.mxu0 0.0
      %541 = vmatpush1.msra.mxu0 0.0
      %542 = vmatprep.mubr.f32.mxu0 0.0
      %543 = vmatmul.mubr.f32.gmra.mrb[0].mxu0 %v473
      %v544 = vpop.f32.mrb[0].mxu0
      %v545 = vadd.f32 %v455, %v544
      %v546 = vpop.f32.mrb[0].mxu0
      %v547 = vadd.f32 %v459, %v546
      %548 = vmatprep.mubr.f32.mxu0 0.0
      %549 = vmatmul.mubr.f32.gmra.mrb[0].mxu0 %v476
      %v550 = vpop.f32.mrb[0].mxu0
      %v551 = vadd.f32 %v455, %v550
      %v552 = vpop.f32.mrb[0].mxu0
      %v553 = vadd.f32 %v459, %v552
      %554 = vdwg.mxu0
      %555 = vmatprep.subr.mxu0 %v437
      %556 = vmatpush1.msra.mxu0 %v436
      %557 = vmatprep.subr.mxu0 %v441
      %558 = vmatpush1.msra.mxu0 %v440
      %559 = vmatprep.subr.mxu0 %v445
      %560 = vmatpush1.msra.mxu0 %v444
      %561 = vmatprep.subr.mxu0 %v449
      %562 = vmatpush1.msra.mxu0 %v448
      %563 = vmatprep.subr.mxu0 0.0
      %564 = vmatpush1.msra.mxu0 0.0
      %565 = vmatprep.subr.mxu0 0.0
      %566 = vmatpush1.msra.mxu0 0.0
      %567 = vmatprep.subr.mxu0 0.0
      %568 = vmatpush1.msra.mxu0 0.0
      %569 = vmatprep.subr.mxu0 0.0
      %570 = vmatpush1.msra.mxu0 0.0
      %571 = vmatprep.subr.mxu0 0.0
      %572 = vmatpush1.msra.mxu0 0.0
      %573 = vmatprep.subr.mxu0 0.0
      %574 = vmatpush1.msra.mxu0 0.0
      %575 = vmatprep.subr.mxu0 0.0
      %576 = vmatpush1.msra.mxu0 0.0
      %577 = vmatprep.subr.mxu0 0.0
      %578 = vmatpush1.msra.mxu0 0.0
      %579 = vmatprep.subr.mxu0 0.0
      %580 = vmatpush1.msra.mxu0 0.0
      %581 = vmatprep.subr.mxu0 0.0
      %582 = vmatpush1.msra.mxu0 0.0
      %583 = vmatprep.subr.mxu0 0.0
      %584 = vmatpush1.msra.mxu0 0.0
      %585 = vmatprep.subr.mxu0 0.0
      %586 = vmatpush1.msra.mxu0 0.0
      %587 = vmatprep.subr.mxu0 0.0
      %588 = vmatpush1.msra.mxu0 0.0
      %589 = vmatprep.subr.mxu0 0.0
      %590 = vmatpush1.msra.mxu0 0.0
      %591 = vmatprep.subr.mxu0 0.0
      %592 = vmatpush1.msra.mxu0 0.0
      %593 = vmatprep.subr.mxu0 0.0
      %594 = vmatpush1.msra.mxu0 0.0
      %595 = vmatprep.subr.mxu0 0.0
      %596 = vmatpush1.msra.mxu0 0.0
      %597 = vmatprep.subr.mxu0 0.0
      %598 = vmatpush1.msra.mxu0 0.0
      %599 = vmatprep.subr.mxu0 0.0
      %600 = vmatpush1.msra.mxu0 0.0
      %601 = vmatprep.subr.mxu0 0.0
      %602 = vmatpush1.msra.mxu0 0.0
      %603 = vmatprep.subr.mxu0 0.0
      %604 = vmatpush1.msra.mxu0 0.0
      %605 = vmatprep.subr.mxu0 0.0
      %606 = vmatpush1.msra.mxu0 0.0
      %607 = vmatprep.subr.mxu0 0.0
      %608 = vmatpush1.msra.mxu0 0.0
      %609 = vmatprep.subr.mxu0 0.0
      %610 = vmatpush1.msra.mxu0 0.0
      %611 = vmatprep.subr.mxu0 0.0
      %612 = vmatpush1.msra.mxu0 0.0
      %613 = vmatprep.subr.mxu0 0.0
      %614 = vmatpush1.msra.mxu0 0.0
      %615 = vmatprep.subr.mxu0 0.0
      %616 = vmatpush1.msra.mxu0 0.0
      %617 = vmatprep.subr.mxu0 0.0
      %618 = vmatpush1.msra.mxu0 0.0
      %619 = vmatprep.mubr.f32.mxu0 0.0
      %620 = vmatmul.mubr.f32.gmra.mrb[0].mxu0 %v473
      %v621 = vpop.f32.mrb[0].mxu0
      %v622 = vadd.f32 %v463, %v621
      %v623 = vpop.f32.mrb[0].mxu0
      %v624 = vadd.f32 %v467, %v623
      %625 = vmatprep.mubr.f32.mxu0 0.0
      %626 = vmatmul.mubr.f32.gmra.mrb[0].mxu0 %v476
      %v627 = vpop.f32.mrb[0].mxu0
      %v628 = vadd.f32 %v463, %v627
      %v629 = vpop.f32.mrb[0].mxu0
      %v630 = vadd.f32 %v467, %v629
      %631 = vdwg.mxu0
      %vm632 = vcmp.gt.f32.partialorder %v545, 0.0
      %vm633 = vcmp.gt.f32.partialorder %v547, 0.0
      %vm634 = vcmp.gt.f32.partialorder %v622, 0.0
      %vm635 = vcmp.gt.f32.partialorder %v624, 0.0
      %vm636 = vcmp.gt.f32.partialorder %v551, 0.0
      %vm637 = vcmp.gt.f32.partialorder %v553, 0.0
      %vm638 = vcmp.gt.f32.partialorder %v628, 0.0
      %vm639 = vcmp.gt.f32.partialorder %v630, 0.0
      %v640 = vmul.f32 %v545, 0.01
      %v641 = vmul.f32 %v547, 0.01
      %v642 = vmul.f32 %v622, 0.01
      %v643 = vmul.f32 %v624, 0.01
      %v644 = vmul.f32 %v551, 0.01
      %v645 = vmul.f32 %v553, 0.01
      %v646 = vmul.f32 %v628, 0.01
      %v647 = vmul.f32 %v630, 0.01
      %v648 = vsel %vm632, %v545, %v640
      %v649 = vsel %vm633, %v547, %v641
      %v650 = vsel %vm634, %v622, %v642
      %v651 = vsel %vm635, %v624, %v643
      %v652 = vsel %vm636, %v551, %v644
      %v653 = vsel %vm637, %v553, %v645
      %v654 = vsel %vm638, %v628, %v646
      %v655 = vsel %vm639, %v630, %v647
      %v656 = vld [vmem:[#allocation8] sm:$0xff]
      %v657 = vld [vmem:[#allocation8 + $0x8] sm:$0xff]
      %v658 = vld [vmem:[#allocation8 + $0x10] sm:$0xff]
      %v659 = vld [vmem:[#allocation8 + $0x18] sm:$0xff]
      %v660 = vld [vmem:[#allocation8 + $0x20] sm:$0xff]
      %v661 = vld [vmem:[#allocation8 + $0x28] sm:$0xff]
      %v662 = vld [vmem:[#allocation8 + $0x30] sm:$0xff]
      %v663 = vld [vmem:[#allocation8 + $0x38] sm:$0xff]
      %v664 = vld [vmem:[#allocation8 + $0x40] sm:$0xff]
      %v665 = vld [vmem:[#allocation8 + $0x48] sm:$0xff]
      %v666 = vld [vmem:[#allocation8 + $0x50] sm:$0xff]
      %v667 = vld [vmem:[#allocation8 + $0x58] sm:$0xff]
      %v668 = vld [vmem:[#allocation8 + $0x60] sm:$0xff]
      %v669 = vld [vmem:[#allocation8 + $0x68] sm:$0xff]
      %v670 = vld [vmem:[#allocation8 + $0x70] sm:$0xff]
      %v671 = vld [vmem:[#allocation8 + $0x78] sm:$0xff]
      %v672 = vld [vmem:[#allocation8 + $0x80] sm:$0xff]
      %v673 = vld [vmem:[#allocation8 + $0x88] sm:$0xff]
      %v674 = vld [vmem:[#allocation8 + $0x90] sm:$0xff]
      %v675 = vld [vmem:[#allocation8 + $0x98] sm:$0xff]
      %v676 = vld [vmem:[#allocation8 + $0xa0] sm:$0xff]
      %v677 = vld [vmem:[#allocation8 + $0xa8] sm:$0xff]
      %v678 = vld [vmem:[#allocation8 + $0xb0] sm:$0xff]
      %v679 = vld [vmem:[#allocation8 + $0xb8] sm:$0xff]
      %v680 = vld [vmem:[#allocation8 + $0xc0] sm:$0xff]
      %v681 = vld [vmem:[#allocation8 + $0xc8] sm:$0xff]
      %v682 = vld [vmem:[#allocation8 + $0xd0] sm:$0xff]
      %v683 = vld [vmem:[#allocation8 + $0xd8] sm:$0xff]
      %v684 = vld [vmem:[#allocation8 + $0xe0] sm:$0xff]
      %v685 = vld [vmem:[#allocation8 + $0xe8] sm:$0xff]
      %v686 = vld [vmem:[#allocation8 + $0xf0] sm:$0xff]
      %v687 = vld [vmem:[#allocation8 + $0xf8] sm:$0xff]
      %v688 = vld [vmem:[#allocation8 + $0x100] sm:$0xff]
      %v689 = vld [vmem:[#allocation8 + $0x108] sm:$0xff]
      %v690 = vld [vmem:[#allocation8 + $0x110] sm:$0xff]
      %v691 = vld [vmem:[#allocation8 + $0x118] sm:$0xff]
      %v692 = vld [vmem:[#allocation8 + $0x120] sm:$0xff]
      %v693 = vld [vmem:[#allocation8 + $0x128] sm:$0xff]
      %v694 = vld [vmem:[#allocation8 + $0x130] sm:$0xff]
      %v695 = vld [vmem:[#allocation8 + $0x138] sm:$0xff]
      %v696 = vld [vmem:[#allocation8 + $0x140] sm:$0xff]
      %v697 = vld [vmem:[#allocation8 + $0x148] sm:$0xff]
      %v698 = vld [vmem:[#allocation8 + $0x150] sm:$0xff]
      %v699 = vld [vmem:[#allocation8 + $0x158] sm:$0xff]
      %v700 = vld [vmem:[#allocation8 + $0x160] sm:$0xff]
      %v701 = vld [vmem:[#allocation8 + $0x168] sm:$0xff]
      %v702 = vld [vmem:[#allocation8 + $0x170] sm:$0xff]
      %v703 = vld [vmem:[#allocation8 + $0x178] sm:$0xff]
      %v704 = vld [vmem:[#allocation8 + $0x180] sm:$0xff]
      %v705 = vld [vmem:[#allocation8 + $0x188] sm:$0xff]
      %v706 = vld [vmem:[#allocation8 + $0x190] sm:$0xff]
      %v707 = vld [vmem:[#allocation8 + $0x198] sm:$0xff]
      %v708 = vld [vmem:[#allocation8 + $0x1a0] sm:$0xff]
      %v709 = vld [vmem:[#allocation8 + $0x1a8] sm:$0xff]
      %v710 = vld [vmem:[#allocation8 + $0x1b0] sm:$0xff]
      %v711 = vld [vmem:[#allocation8 + $0x1b8] sm:$0xff]
      %v712 = vld [vmem:[#allocation8 + $0x1c0] sm:$0xff]
      %v713 = vld [vmem:[#allocation8 + $0x1c8] sm:$0xff]
      %v714 = vld [vmem:[#allocation8 + $0x1d0] sm:$0xff]
      %v715 = vld [vmem:[#allocation8 + $0x1d8] sm:$0xff]
      %v716 = vld [vmem:[#allocation8 + $0x1e0] sm:$0xff]
      %v717 = vld [vmem:[#allocation8 + $0x1e8] sm:$0xff]
      %v718 = vld [vmem:[#allocation8 + $0x1f0] sm:$0xff]
      %v719 = vld [vmem:[#allocation8 + $0x1f8] sm:$0xff]
      %v720 = vld [vmem:[#allocation8 + $0x200] sm:$0xff]
      %v721 = vld [vmem:[#allocation8 + $0x208] sm:$0xff]
      %v722 = vld [vmem:[#allocation8 + $0x210] sm:$0xff]
      %v723 = vld [vmem:[#allocation8 + $0x218] sm:$0xff]
      %v724 = vld [vmem:[#allocation8 + $0x220] sm:$0xff]
      %v725 = vld [vmem:[#allocation8 + $0x228] sm:$0xff]
      %v726 = vld [vmem:[#allocation8 + $0x230] sm:$0xff]
      %v727 = vld [vmem:[#allocation8 + $0x238] sm:$0xff]
      %v728 = vld [vmem:[#allocation8 + $0x240] sm:$0xff]
      %v729 = vld [vmem:[#allocation8 + $0x248] sm:$0xff]
      %v730 = vld [vmem:[#allocation8 + $0x250] sm:$0xff]
      %v731 = vld [vmem:[#allocation8 + $0x258] sm:$0xff]
      %v732 = vld [vmem:[#allocation8 + $0x260] sm:$0xff]
      %v733 = vld [vmem:[#allocation8 + $0x268] sm:$0xff]
      %v734 = vld [vmem:[#allocation8 + $0x270] sm:$0xff]
      %v735 = vld [vmem:[#allocation8 + $0x278] sm:$0xff]
      %v736 = vld [vmem:[#allocation8 + $0x280] sm:$0xff]
      %v737 = vld [vmem:[#allocation8 + $0x288] sm:$0xff]
      %v738 = vld [vmem:[#allocation8 + $0x290] sm:$0xff]
      %v739 = vld [vmem:[#allocation8 + $0x298] sm:$0xff]
      %v740 = vld [vmem:[#allocation8 + $0x2a0] sm:$0xff]
      %v741 = vld [vmem:[#allocation8 + $0x2a8] sm:$0xff]
      %v742 = vld [vmem:[#allocation8 + $0x2b0] sm:$0xff]
      %v743 = vld [vmem:[#allocation8 + $0x2b8] sm:$0xff]
      %v744 = vld [vmem:[#allocation8 + $0x2c0] sm:$0xff]
      %v745 = vld [vmem:[#allocation8 + $0x2c8] sm:$0xff]
      %v746 = vld [vmem:[#allocation8 + $0x2d0] sm:$0xff]
      %v747 = vld [vmem:[#allocation8 + $0x2d8] sm:$0xff]
      %v748 = vld [vmem:[#allocation8 + $0x2e0] sm:$0xff]
      %v749 = vld [vmem:[#allocation8 + $0x2e8] sm:$0xff]
      %v750 = vld [vmem:[#allocation8 + $0x2f0] sm:$0xff]
      %v751 = vld [vmem:[#allocation8 + $0x2f8] sm:$0xff]
      %v752 = vld [vmem:[#allocation8 + $0x300] sm:$0xff]
      %v753 = vld [vmem:[#allocation8 + $0x308] sm:$0xff]
      %v754 = vld [vmem:[#allocation8 + $0x310] sm:$0xff]
      %v755 = vld [vmem:[#allocation8 + $0x318] sm:$0xff]
      %v756 = vld [vmem:[#allocation8 + $0x320] sm:$0xff]
      %v757 = vld [vmem:[#allocation8 + $0x328] sm:$0xff]
      %v758 = vld [vmem:[#allocation8 + $0x330] sm:$0xff]
      %v759 = vld [vmem:[#allocation8 + $0x338] sm:$0xff]
      %v760 = vld [vmem:[#allocation8 + $0x340] sm:$0xff]
      %v761 = vld [vmem:[#allocation8 + $0x348] sm:$0xff]
      %v762 = vld [vmem:[#allocation8 + $0x350] sm:$0xff]
      %v763 = vld [vmem:[#allocation8 + $0x358] sm:$0xff]
      %v764 = vld [vmem:[#allocation8 + $0x360] sm:$0xff]
      %v765 = vld [vmem:[#allocation8 + $0x368] sm:$0xff]
      %v766 = vld [vmem:[#allocation8 + $0x370] sm:$0xff]
      %v767 = vld [vmem:[#allocation8 + $0x378] sm:$0xff]
      %v768 = vld [vmem:[#allocation8 + $0x380] sm:$0xff]
      %v769 = vld [vmem:[#allocation8 + $0x388] sm:$0xff]
      %v770 = vld [vmem:[#allocation8 + $0x390] sm:$0xff]
      %v771 = vld [vmem:[#allocation8 + $0x398] sm:$0xff]
      %v772 = vld [vmem:[#allocation8 + $0x3a0] sm:$0xff]
      %v773 = vld [vmem:[#allocation8 + $0x3a8] sm:$0xff]
      %v774 = vld [vmem:[#allocation8 + $0x3b0] sm:$0xff]
      %v775 = vld [vmem:[#allocation8 + $0x3b8] sm:$0xff]
      %v776 = vld [vmem:[#allocation8 + $0x3c0] sm:$0xff]
      %v777 = vld [vmem:[#allocation8 + $0x3c8] sm:$0xff]
      %v778 = vld [vmem:[#allocation8 + $0x3d0] sm:$0xff]
      %v779 = vld [vmem:[#allocation8 + $0x3d8] sm:$0xff]
      %v780 = vld [vmem:[#allocation8 + $0x3e0] sm:$0xff]
      %v781 = vld [vmem:[#allocation8 + $0x3e8] sm:$0xff]
      %v782 = vld [vmem:[#allocation8 + $0x3f0] sm:$0xff]
      %v783 = vld [vmem:[#allocation8 + $0x3f8] sm:$0xff]
      %v784 = vld [vmem:[%s6] sm:$0x3]
      %v786 = vlaneseq
      %v787 = vshrl.u32 %v786, 7
      %v788 = vsub.s32 0, %v787
      %v789 = vrot.slane %v784, %v788
      %v790 = vlaneseq
      %v791 = vshrl.u32 %v790, 7
      %v792 = vsub.s32 1, %v791
      %v793 = vrot.slane %v784, %v792
      %796 = vmatprep.subr.mxu0 %v657
      %797 = vmatpush1.msra.mxu0 %v656
      %798 = vmatprep.subr.mxu0 %v659
      %799 = vmatpush1.msra.mxu0 %v658
      %800 = vmatprep.subr.mxu0 %v661
      %801 = vmatpush1.msra.mxu0 %v660
      %802 = vmatprep.subr.mxu0 %v663
      %803 = vmatpush1.msra.mxu0 %v662
      %804 = vmatprep.subr.mxu0 %v665
      %805 = vmatpush1.msra.mxu0 %v664
      %806 = vmatprep.subr.mxu0 %v667
      %807 = vmatpush1.msra.mxu0 %v666
      %808 = vmatprep.subr.mxu0 %v669
      %809 = vmatpush1.msra.mxu0 %v668
      %810 = vmatprep.subr.mxu0 %v671
      %811 = vmatpush1.msra.mxu0 %v670
      %812 = vmatprep.subr.mxu0 %v673
      %813 = vmatpush1.msra.mxu0 %v672
      %814 = vmatprep.subr.mxu0 %v675
      %815 = vmatpush1.msra.mxu0 %v674
      %816 = vmatprep.subr.mxu0 %v677
      %817 = vmatpush1.msra.mxu0 %v676
      %818 = vmatprep.subr.mxu0 %v679
      %819 = vmatpush1.msra.mxu0 %v678
      %820 = vmatprep.subr.mxu0 %v681
      %821 = vmatpush1.msra.mxu0 %v680
      %822 = vmatprep.subr.mxu0 %v683
      %823 = vmatpush1.msra.mxu0 %v682
      %824 = vmatprep.subr.mxu0 %v685
      %825 = vmatpush1.msra.mxu0 %v684
      %826 = vmatprep.subr.mxu0 %v687
      %827 = vmatpush1.msra.mxu0 %v686
      %828 = vmatprep.subr.mxu0 %v689
      %829 = vmatpush1.msra.mxu0 %v688
      %830 = vmatprep.subr.mxu0 %v691
      %831 = vmatpush1.msra.mxu0 %v690
      %832 = vmatprep.subr.mxu0 %v693
      %833 = vmatpush1.msra.mxu0 %v692
      %834 = vmatprep.subr.mxu0 %v695
      %835 = vmatpush1.msra.mxu0 %v694
      %836 = vmatprep.subr.mxu0 %v697
      %837 = vmatpush1.msra.mxu0 %v696
      %838 = vmatprep.subr.mxu0 %v699
      %839 = vmatpush1.msra.mxu0 %v698
      %840 = vmatprep.subr.mxu0 %v701
      %841 = vmatpush1.msra.mxu0 %v700
      %842 = vmatprep.subr.mxu0 %v703
      %843 = vmatpush1.msra.mxu0 %v702
      %844 = vmatprep.subr.mxu0 %v705
      %845 = vmatpush1.msra.mxu0 %v704
      %846 = vmatprep.subr.mxu0 %v707
      %847 = vmatpush1.msra.mxu0 %v706
      %848 = vmatprep.subr.mxu0 %v709
      %849 = vmatpush1.msra.mxu0 %v708
      %850 = vmatprep.subr.mxu0 %v711
      %851 = vmatpush1.msra.mxu0 %v710
      %852 = vmatprep.subr.mxu0 %v713
      %853 = vmatpush1.msra.mxu0 %v712
      %854 = vmatprep.subr.mxu0 %v715
      %855 = vmatpush1.msra.mxu0 %v714
      %856 = vmatprep.subr.mxu0 %v717
      %857 = vmatpush1.msra.mxu0 %v716
      %858 = vmatprep.subr.mxu0 %v719
      %859 = vmatpush1.msra.mxu0 %v718
      %860 = vmatprep.mubr.f32.mxu0 %v649
      %861 = vmatmul.mubr.f32.gmra.mrb[0].mxu0 %v648
      %v862 = vpop.f32.mrb[0].mxu0
      %v863 = vadd.f32 %v789, %v862
      %v864 = vpop.f32.mrb[0].mxu0
      %v865 = vadd.f32 %v793, %v864
      %866 = vmatprep.mubr.f32.mxu0 %v653
      %867 = vmatmul.mubr.f32.gmra.mrb[0].mxu0 %v652
      %v868 = vpop.f32.mrb[0].mxu0
      %v869 = vadd.f32 %v789, %v868
      %v870 = vpop.f32.mrb[0].mxu0
      %v871 = vadd.f32 %v793, %v870
      %872 = vdwg.mxu0
      %873 = vmatprep.subr.mxu0 %v721
      %874 = vmatpush1.msra.mxu0 %v720
      %875 = vmatprep.subr.mxu0 %v723
      %876 = vmatpush1.msra.mxu0 %v722
      %877 = vmatprep.subr.mxu0 %v725
      %878 = vmatpush1.msra.mxu0 %v724
      %879 = vmatprep.subr.mxu0 %v727
      %880 = vmatpush1.msra.mxu0 %v726
      %881 = vmatprep.subr.mxu0 %v729
      %882 = vmatpush1.msra.mxu0 %v728
      %883 = vmatprep.subr.mxu0 %v731
      %884 = vmatpush1.msra.mxu0 %v730
      %885 = vmatprep.subr.mxu0 %v733
      %886 = vmatpush1.msra.mxu0 %v732
      %887 = vmatprep.subr.mxu0 %v735
      %888 = vmatpush1.msra.mxu0 %v734
      %889 = vmatprep.subr.mxu0 %v737
      %890 = vmatpush1.msra.mxu0 %v736
      %891 = vmatprep.subr.mxu0 %v739
      %892 = vmatpush1.msra.mxu0 %v738
      %893 = vmatprep.subr.mxu0 %v741
      %894 = vmatpush1.msra.mxu0 %v740
      %895 = vmatprep.subr.mxu0 %v743
      %896 = vmatpush1.msra.mxu0 %v742
      %897 = vmatprep.subr.mxu0 %v745
      %898 = vmatpush1.msra.mxu0 %v744
      %899 = vmatprep.subr.mxu0 %v747
      %900 = vmatpush1.msra.mxu0 %v746
      %901 = vmatprep.subr.mxu0 %v749
      %902 = vmatpush1.msra.mxu0 %v748
      %903 = vmatprep.subr.mxu0 %v751
      %904 = vmatpush1.msra.mxu0 %v750
      %905 = vmatprep.subr.mxu0 %v753
      %906 = vmatpush1.msra.mxu0 %v752
      %907 = vmatprep.subr.mxu0 %v755
      %908 = vmatpush1.msra.mxu0 %v754
      %909 = vmatprep.subr.mxu0 %v757
      %910 = vmatpush1.msra.mxu0 %v756
      %911 = vmatprep.subr.mxu0 %v759
      %912 = vmatpush1.msra.mxu0 %v758
      %913 = vmatprep.subr.mxu0 %v761
      %914 = vmatpush1.msra.mxu0 %v760
      %915 = vmatprep.subr.mxu0 %v763
      %916 = vmatpush1.msra.mxu0 %v762
      %917 = vmatprep.subr.mxu0 %v765
      %918 = vmatpush1.msra.mxu0 %v764
      %919 = vmatprep.subr.mxu0 %v767
      %920 = vmatpush1.msra.mxu0 %v766
      %921 = vmatprep.subr.mxu0 %v769
      %922 = vmatpush1.msra.mxu0 %v768
      %923 = vmatprep.subr.mxu0 %v771
      %924 = vmatpush1.msra.mxu0 %v770
      %925 = vmatprep.subr.mxu0 %v773
      %926 = vmatpush1.msra.mxu0 %v772
      %927 = vmatprep.subr.mxu0 %v775
      %928 = vmatpush1.msra.mxu0 %v774
      %929 = vmatprep.subr.mxu0 %v777
      %930 = vmatpush1.msra.mxu0 %v776
      %931 = vmatprep.subr.mxu0 %v779
      %932 = vmatpush1.msra.mxu0 %v778
      %933 = vmatprep.subr.mxu0 %v781
      %934 = vmatpush1.msra.mxu0 %v780
      %935 = vmatprep.subr.mxu0 %v783
      %936 = vmatpush1.msra.mxu0 %v782
      %937 = vmatprep.mubr.f32.mxu0 %v651
      %938 = vmatmul.mubr.f32.gmra.mrb[0].mxu0 %v650
      %v939 = vpop.f32.mrb[0].mxu0
      %v940 = vadd.f32 %v863, %v939
      %v941 = vpop.f32.mrb[0].mxu0
      %v942 = vadd.f32 %v865, %v941
      %943 = vmatprep.mubr.f32.mxu0 %v655
      %944 = vmatmul.mubr.f32.gmra.mrb[0].mxu0 %v654
      %v945 = vpop.f32.mrb[0].mxu0
      %v946 = vadd.f32 %v869, %v945
      %v947 = vpop.f32.mrb[0].mxu0
      %v948 = vadd.f32 %v871, %v947
      %949 = vdwg.mxu0
      %vm950 = vcmp.gt.f32.partialorder %v940, 0.0
      %vm951 = vcmp.gt.f32.partialorder %v942, 0.0
      %vm952 = vcmp.gt.f32.partialorder %v946, 0.0
      %vm953 = vcmp.gt.f32.partialorder %v948, 0.0
      %v954 = vmul.f32 %v940, 0.01
      %v955 = vmul.f32 %v942, 0.01
      %v956 = vmul.f32 %v946, 0.01
      %v957 = vmul.f32 %v948, 0.01
      %v958 = vsel %vm950, %v940, %v954
      %v959 = vsel %vm951, %v942, %v955
      %v960 = vsel %vm952, %v946, %v956
      %v961 = vsel %vm953, %v948, %v957
      %v962 = vld [vmem:[#allocation9] sm:$0xff]
      %v963 = vld [vmem:[#allocation9 + $0x8] sm:$0xff]
      %v964 = vld [vmem:[#allocation9 + $0x10] sm:$0xff]
      %v965 = vld [vmem:[#allocation9 + $0x18] sm:$0xff]
      %v966 = vld [vmem:[#allocation9 + $0x20] sm:$0xff]
      %v967 = vld [vmem:[#allocation9 + $0x28] sm:$0xff]
      %v968 = vld [vmem:[#allocation9 + $0x30] sm:$0xff]
      %v969 = vld [vmem:[#allocation9 + $0x38] sm:$0xff]
      %v970 = vld [vmem:[#allocation9 + $0x40] sm:$0xff]
      %v971 = vld [vmem:[#allocation9 + $0x48] sm:$0xff]
      %v972 = vld [vmem:[#allocation9 + $0x50] sm:$0xff]
      %v973 = vld [vmem:[#allocation9 + $0x58] sm:$0xff]
      %v974 = vld [vmem:[#allocation9 + $0x60] sm:$0xff]
      %v975 = vld [vmem:[#allocation9 + $0x68] sm:$0xff]
      %v976 = vld [vmem:[#allocation9 + $0x70] sm:$0xff]
      %v977 = vld [vmem:[#allocation9 + $0x78] sm:$0xff]
      %v978 = vld [vmem:[#allocation9 + $0x80] sm:$0xff]
      %v979 = vld [vmem:[#allocation9 + $0x88] sm:$0xff]
      %v980 = vld [vmem:[#allocation9 + $0x90] sm:$0xff]
      %v981 = vld [vmem:[#allocation9 + $0x98] sm:$0xff]
      %v982 = vld [vmem:[#allocation9 + $0xa0] sm:$0xff]
      %v983 = vld [vmem:[#allocation9 + $0xa8] sm:$0xff]
      %v984 = vld [vmem:[#allocation9 + $0xb0] sm:$0xff]
      %v985 = vld [vmem:[#allocation9 + $0xb8] sm:$0xff]
      %v986 = vld [vmem:[#allocation9 + $0xc0] sm:$0xff]
      %v987 = vld [vmem:[#allocation9 + $0xc8] sm:$0xff]
      %v988 = vld [vmem:[#allocation9 + $0xd0] sm:$0xff]
      %v989 = vld [vmem:[#allocation9 + $0xd8] sm:$0xff]
      %v990 = vld [vmem:[#allocation9 + $0xe0] sm:$0xff]
      %v991 = vld [vmem:[#allocation9 + $0xe8] sm:$0xff]
      %v992 = vld [vmem:[#allocation9 + $0xf0] sm:$0xff]
      %v993 = vld [vmem:[#allocation9 + $0xf8] sm:$0xff]
      %v994 = vld [vmem:[%s8] sm:$0x1]
      %v996 = vlaneseq
      %v997 = vshrl.u32 %v996, 7
      %v998 = vsub.s32 0, %v997
      %v999 = vrot.slane %v994, %v998
      %1001 = vmatprep.subr.mxu0 0.0
      %1002 = vmatpush1.msra.mxu0 %v962
      %1003 = vmatprep.subr.mxu0 0.0
      %1004 = vmatpush1.msra.mxu0 %v963
      %1005 = vmatprep.subr.mxu0 0.0
      %1006 = vmatpush1.msra.mxu0 %v964
      %1007 = vmatprep.subr.mxu0 0.0
      %1008 = vmatpush1.msra.mxu0 %v965
      %1009 = vmatprep.subr.mxu0 0.0
      %1010 = vmatpush1.msra.mxu0 %v966
      %1011 = vmatprep.subr.mxu0 0.0
      %1012 = vmatpush1.msra.mxu0 %v967
      %1013 = vmatprep.subr.mxu0 0.0
      %1014 = vmatpush1.msra.mxu0 %v968
      %1015 = vmatprep.subr.mxu0 0.0
      %1016 = vmatpush1.msra.mxu0 %v969
      %1017 = vmatprep.subr.mxu0 0.0
      %1018 = vmatpush1.msra.mxu0 %v970
      %1019 = vmatprep.subr.mxu0 0.0
      %1020 = vmatpush1.msra.mxu0 %v971
      %1021 = vmatprep.subr.mxu0 0.0
      %1022 = vmatpush1.msra.mxu0 %v972
      %1023 = vmatprep.subr.mxu0 0.0
      %1024 = vmatpush1.msra.mxu0 %v973
      %1025 = vmatprep.subr.mxu0 0.0
      %1026 = vmatpush1.msra.mxu0 %v974
      %1027 = vmatprep.subr.mxu0 0.0
      %1028 = vmatpush1.msra.mxu0 %v975
      %1029 = vmatprep.subr.mxu0 0.0
      %1030 = vmatpush1.msra.mxu0 %v976
      %1031 = vmatprep.subr.mxu0 0.0
      %1032 = vmatpush1.msra.mxu0 %v977
      %1033 = vmatprep.subr.mxu0 0.0
      %1034 = vmatpush1.msra.mxu0 %v978
      %1035 = vmatprep.subr.mxu0 0.0
      %1036 = vmatpush1.msra.mxu0 %v979
      %1037 = vmatprep.subr.mxu0 0.0
      %1038 = vmatpush1.msra.mxu0 %v980
      %1039 = vmatprep.subr.mxu0 0.0
      %1040 = vmatpush1.msra.mxu0 %v981
      %1041 = vmatprep.subr.mxu0 0.0
      %1042 = vmatpush1.msra.mxu0 %v982
      %1043 = vmatprep.subr.mxu0 0.0
      %1044 = vmatpush1.msra.mxu0 %v983
      %1045 = vmatprep.subr.mxu0 0.0
      %1046 = vmatpush1.msra.mxu0 %v984
      %1047 = vmatprep.subr.mxu0 0.0
      %1048 = vmatpush1.msra.mxu0 %v985
      %1049 = vmatprep.subr.mxu0 0.0
      %1050 = vmatpush1.msra.mxu0 %v986
      %1051 = vmatprep.subr.mxu0 0.0
      %1052 = vmatpush1.msra.mxu0 %v987
      %1053 = vmatprep.subr.mxu0 0.0
      %1054 = vmatpush1.msra.mxu0 %v988
      %1055 = vmatprep.subr.mxu0 0.0
      %1056 = vmatpush1.msra.mxu0 %v989
      %1057 = vmatprep.subr.mxu0 0.0
      %1058 = vmatpush1.msra.mxu0 %v990
      %1059 = vmatprep.subr.mxu0 0.0
      %1060 = vmatpush1.msra.mxu0 %v991
      %1061 = vmatprep.subr.mxu0 0.0
      %1062 = vmatpush1.msra.mxu0 %v992
      %1063 = vmatprep.subr.mxu0 0.0
      %1064 = vmatpush1.msra.mxu0 %v993
      %1065 = vmatprep.mubr.f32.mxu0 %v959
      %1066 = vmatmul.mubr.f32.gmra.mrb[0].mxu0 %v958
      %v1067 = vpop.f32.mrb[0].mxu0
      %v1068 = vadd.f32 %v999, %v1067
      %v1069 = vpop.f32.mrb[0].mxu0
      %1070 = vmatprep.mubr.f32.mxu0 %v961
      %1071 = vmatmul.mubr.f32.gmra.mrb[0].mxu0 %v960
      %v1072 = vpop.f32.mrb[0].mxu0
      %v1073 = vadd.f32 %v999, %v1072
      %v1074 = vpop.f32.mrb[0].mxu0
      %1075 = vdwg.mxu0
      %1076 = vst [vmem:[#allocation11] sm:$0xff] %v1068
      %1077 = vst [vmem:[#allocation11 + $0x8] sm:$0xff] %v1073
    $region61: #{tpu_custom_call.1} parent=1 // pred_fallthru
      _
    // Predicated region
    $region62: #{tpu_custom_call.1} parent=1 // pred_check
      _
    $region63: #{tpu_custom_call.1} parent=1 // pred_check_branch
      %1079 = sbr.rel (0) target = $region65
    $region64: #{tpu_custom_call.1} parent=1 // pred_region
      %s1081 = ssub.s32 256, 256
      %1082 = vsyncadd [#allocation5], %s1081
      %s1083 = sshll.u32 [#allocation11], 4
      %s1084 = int_to_ptr.vmem [resolvable:$true] %s1083
      %1089 = dma.vmem_to_hbm [thread:$0]  %s1084, 256, %s9, [#allocation5], 128, 128, 8
    $region65: #{tpu_custom_call.1} parent=1 // pred_fallthru
      _
    // Predicated region
    $region66: #{tpu_custom_call.1} parent=1 // pred_check
      _
    $region67: #{tpu_custom_call.1} parent=1 // pred_check_branch
      %1091 = sbr.rel (0) target = $region69
    $region68: #{tpu_custom_call.1} parent=1 // pred_region
      %1092 = dma.done [#allocation5], 256
    $region69: #{tpu_custom_call.1} parent=1 // pred_fallthru
      _
    %1093 = vsyncpa [#allocation4], 1
    %1094 = vsyncpa [#allocation7], 1
    %1095 = vsyncpa [#allocation10], 1
    %1096 = vsyncpa [#allocation5], 1

</llo_original>
